<compile_context>
chip_gen: v6e
topology: v6e:2x2x1
jax: 0.10.0
libtpu: 0.0.40
codegen_flags: <defaults>
</compile_context>

<pallas_src>
import functools

import jax
import jax.numpy as jnp
from jax.experimental import pallas as pl
from jax.experimental.pallas import tpu as pltpu

LANE = 128
SUBLANE = 8


def _round_up(n, m):
    return (n + m - 1) // m * m


def _k_round(n):
    # Contraction-dim rounding: bf16 sublane tiles are 16 rows, so keep weight
    # row-slices 16-aligned; once a dim spans >1 lane tile, use the 128 padding.
    return _round_up(n, 16) if n <= LANE else _round_up(n, LANE)


def simple_actor_kernel(x_ref, w_ref, t_ref, o_ref, *, s_dim, s_k, h_k):
    """One batch tile of the 4-layer MLP, entirely in VMEM.

    w_ref: bf16 (s_k + 2*h_k, h_pad) slab = [W1 | W2 | W3] stacked on rows.
    t_ref: f32 (8, h_pad) tail: row0 = w4 (as a row), rows 1..3 = b1..b3,
           row4 = b4 replicated across lanes. All padded regions are zero.
    """
    x = x_ref[...].astype(jnp.float32)                     # (tb, S)
    if s_k != s_dim:                                       # VMEM-only pad (no-op here)
        x = jnp.pad(x, ((0, 0), (0, s_k - s_dim)))

    w1 = w_ref[0:s_k, :]
    w2 = w_ref[s_k:s_k + h_k, :]
    w3 = w_ref[s_k + h_k:s_k + 2 * h_k, :]
    w4_row = t_ref[0:1, :]
    b1 = t_ref[1:2, :]
    b2 = t_ref[2:3, :]
    b3 = t_ref[3:4, :]
    b4 = t_ref[4:5, 0:1]                                   # (1, 1)

    # bf16 MXU operands over the true (tile-rounded) K dims; f32 accumulation,
    # f32 bias add + ReLU.
    h1 = jnp.maximum(
        jnp.dot(x.astype(jnp.bfloat16), w1, preferred_element_type=jnp.float32) + b1, 0.0)
    h2 = jnp.maximum(
        jnp.dot(h1[:, :h_k].astype(jnp.bfloat16), w2,
                preferred_element_type=jnp.float32) + b2, 0.0)
    h3 = jnp.maximum(
        jnp.dot(h2[:, :h_k].astype(jnp.bfloat16), w3,
                preferred_element_type=jnp.float32) + b3, 0.0)

    # Final H->1 projection on VPU (mul) + XLU (lane reduce) in f32 — skips the MXU.
    y = jnp.sum(h3 * w4_row, axis=-1, keepdims=True) + b4  # (tb, 1)
    o_ref[...] = y.astype(o_ref.dtype)


def pack_params(params, state_size, hidden_state_size):
    """One-time packing: bf16 weight slab + small f32 bias/w4 tail."""
    S, H = state_size, hidden_state_size
    s_k = _k_round(S)
    h_k = _k_round(H)
    h_pad = _round_up(H, LANE)

    w1 = jnp.zeros((s_k, h_pad), jnp.float32).at[:S, :H].set(params["w1"])
    w2 = jnp.zeros((h_k, h_pad), jnp.float32).at[:H, :H].set(params["w2"])
    w3 = jnp.zeros((h_k, h_pad), jnp.float32).at[:H, :H].set(params["w3"])
    w_slab = jnp.concatenate([w1, w2, w3], axis=0).astype(jnp.bfloat16)

    tail = jnp.zeros((8, h_pad), jnp.float32)
    tail = tail.at[0, :H].set(params["w4"][:, 0])
    tail = tail.at[1, :H].set(params["b1"][0])
    tail = tail.at[2, :H].set(params["b2"][0])
    tail = tail.at[3, :H].set(params["b3"][0])
    tail = tail.at[4, :].set(params["b4"][0, 0])           # scalar across lanes
    return w_slab, tail, s_k, h_k, h_pad


def simple_actor_forward(x, params, *, block_batch=1024):
    """x: (B, state_size) f32. Returns (B, 1) f32 == PyTorch SimpleActor forward."""
    B, S = x.shape
    H = params["w1"].shape[1]
    w_slab, tail, s_k, h_k, h_pad = pack_params(params, S, H)
    rows = w_slab.shape[0]

    # Only the batch dim is padded; feature dim stays at the true S.
    b8 = _round_up(max(B, SUBLANE), SUBLANE)
    tb = min(block_batch, b8)
    if b8 // tb < 2 and b8 > SUBLANE:
        # At least two grid steps so "parallel" can shard across v7x's 2 TCs.
        tb = _round_up(-(-b8 // 2), SUBLANE)
    b_pad = _round_up(b8, tb)
    x_b = x if b_pad == B else jnp.zeros((b_pad, S), x.dtype).at[:B].set(x)

    kernel = functools.partial(simple_actor_kernel, s_dim=S, s_k=s_k, h_k=h_k)

    out = pl.pallas_call(
        kernel,
        out_shape=jax.ShapeDtypeStruct((b_pad, 1), jnp.float32),
        grid=(b_pad // tb,),
        in_specs=[
            pl.BlockSpec((tb, S), lambda i: (i, 0)),        # streamed batch tiles
            pl.BlockSpec((rows, h_pad), lambda i: (0, 0)),  # resident bf16 weight slab
            pl.BlockSpec((8, h_pad), lambda i: (0, 0)),     # resident f32 biases / w4
        ],
        out_specs=pl.BlockSpec((tb, 1), lambda i: (i, 0)),  # narrow output: 128x fewer bytes
        compiler_params=pltpu.CompilerParams(
            dimension_semantics=("parallel",),              # batch axis shards on v7x TCs
        ),
    )(x_b, w_slab, tail)

    return out[:B]


def init_params(key, state_size, hidden_state_size):
    """Deterministic synthetic init matching nn.Linear shapes (stored (in, out))."""
    ks = jax.random.split(key, 8)
    si = 1.0 / jnp.sqrt(state_size)
    sh = 1.0 / jnp.sqrt(hidden_state_size)
    return {
        "w1": jax.random.uniform(ks[0], (state_size, hidden_state_size), jnp.float32, -si, si),
        "b1": jax.random.uniform(ks[1], (1, hidden_state_size), jnp.float32, -si, si),
        "w2": jax.random.uniform(ks[2], (hidden_state_size, hidden_state_size), jnp.float32, -sh, sh),
        "b2": jax.random.uniform(ks[3], (1, hidden_state_size), jnp.float32, -sh, sh),
        "w3": jax.random.uniform(ks[4], (hidden_state_size, hidden_state_size), jnp.float32, -sh, sh),
        "b3": jax.random.uniform(ks[5], (1, hidden_state_size), jnp.float32, -sh, sh),
        "w4": jax.random.uniform(ks[6], (hidden_state_size, 1), jnp.float32, -sh, sh),
        "b4": jax.random.uniform(ks[7], (1, 1), jnp.float32, -sh, sh),
    }


if __name__ == "__main__":
    key = jax.random.PRNGKey(0)
    k_params, k_x = jax.random.split(key)

    batch = 8
    state_size = 16
    hidden_state_size = 32

    params = init_params(k_params, state_size, hidden_state_size)
    x = jax.random.normal(k_x, (batch, state_size), dtype=jnp.float32)

    out = simple_actor_forward(x, params)
    out = jax.block_until_ready(out)

    # Pure-JAX reference (same math, outside Pallas, unpadded f32 params).
    def ref(x, p):
        h = jnp.maximum(x @ p["w1"] + p["b1"], 0.0)
        h = jnp.maximum(h @ p["w2"] + p["b2"], 0.0)
        h = jnp.maximum(h @ p["w3"] + p["b3"], 0.0)
        return h @ p["w4"] + p["b4"]

    expected = ref(x, params)
    assert out.shape == (batch, 1), out.shape
    # bf16 MXU operands (f32 accumulation) -> looser tolerance than pure f32.
    assert jnp.allclose(out, expected, atol=2e-2, rtol=2e-2), "mismatch vs reference"
    print("KERNEL_OK")
</pallas_src>

<mosaic_0001>
module attributes {stable_mosaic.version = 11 : i64} {
  func.func @simple_actor_kernel(%arg0: i32, %arg1: memref<8x16xf32, #tpu.memory_space<vmem>>, %arg2: memref<80x128xbf16, #tpu.memory_space<vmem>>, %arg3: memref<8x128xf32, #tpu.memory_space<vmem>>, %arg4: memref<8x1xf32, #tpu.memory_space<vmem>>) attributes {dimension_semantics = [#tpu.dimension_semantics<parallel>], iteration_bounds = array<i64: 1>, scalar_prefetch = 0 : i64, scratch_operands = 0 : i64, tpu.core_type = #tpu.core_type<tc>, window_params = [{transform_indices = @transform_0, window_bounds = array<i64: 8, 16>}, {pipeline_mode = #tpu.pipeline_mode<synchronous>, transform_indices = @transform_1, window_bounds = array<i64: 80, 128>}, {pipeline_mode = #tpu.pipeline_mode<synchronous>, transform_indices = @transform_2, window_bounds = array<i64: 8, 128>}, {transform_indices = @transform_3, window_bounds = array<i64: 8, 1>}]} {
    %c0 = arith.constant 0 : index
    %c0_0 = arith.constant 0 : index
    %0 = vector.load %arg1[%c0, %c0_0] : memref<8x16xf32, #tpu.memory_space<vmem>>, vector<8x16xf32>
    %c0_1 = arith.constant 0 : index
    %c0_2 = arith.constant 0 : index
    %1 = vector.load %arg2[%c0_1, %c0_2] : memref<80x128xbf16, #tpu.memory_space<vmem>>, vector<16x128xbf16>
    %c16 = arith.constant 16 : index
    %c0_3 = arith.constant 0 : index
    %2 = vector.load %arg2[%c16, %c0_3] : memref<80x128xbf16, #tpu.memory_space<vmem>>, vector<32x128xbf16>
    %c48 = arith.constant 48 : index
    %c0_4 = arith.constant 0 : index
    %3 = vector.load %arg2[%c48, %c0_4] : memref<80x128xbf16, #tpu.memory_space<vmem>>, vector<32x128xbf16>
    %c0_5 = arith.constant 0 : index
    %c0_6 = arith.constant 0 : index
    %4 = vector.load %arg3[%c0_5, %c0_6] : memref<8x128xf32, #tpu.memory_space<vmem>>, vector<1x128xf32>
    %c1 = arith.constant 1 : index
    %c0_7 = arith.constant 0 : index
    %5 = vector.load %arg3[%c1, %c0_7] : memref<8x128xf32, #tpu.memory_space<vmem>>, vector<1x128xf32>
    %c2 = arith.constant 2 : index
    %c0_8 = arith.constant 0 : index
    %6 = vector.load %arg3[%c2, %c0_8] : memref<8x128xf32, #tpu.memory_space<vmem>>, vector<1x128xf32>
    %c3 = arith.constant 3 : index
    %c0_9 = arith.constant 0 : index
    %7 = vector.load %arg3[%c3, %c0_9] : memref<8x128xf32, #tpu.memory_space<vmem>>, vector<1x128xf32>
    %c4 = arith.constant 4 : index
    %c0_10 = arith.constant 0 : index
    %8 = vector.load %arg3[%c4, %c0_10] : memref<8x128xf32, #tpu.memory_space<vmem>>, vector<1x1xf32>
    %9 = arith.truncf %0 : vector<8x16xf32> to vector<8x16xbf16>
    %cst = arith.constant dense<0.000000e+00> : vector<8x128xf32>
    %10 = tpu.matmul %9, %1, %cst {dimension_numbers = #tpu.dot_dimension_numbers<[1], [0], [0], [1], [0, 0, 1, 1], [], []>} : vector<8x16xbf16>, vector<16x128xbf16>, vector<8x128xf32> -> vector<8x128xf32>
    %11 = vector.broadcast %5 : vector<1x128xf32> to vector<8x128xf32>
    %12 = arith.addf %10, %11 : vector<8x128xf32>
    %cst_11 = arith.constant 0.000000e+00 : f32
    %13 = vector.broadcast %cst_11 : f32 to vector<8x128xf32>
    %14 = arith.maximumf %12, %13 : vector<8x128xf32>
    %15 = vector.extract_strided_slice %14 {offsets = [0, 0], sizes = [8, 32], strides = [1, 1]} : vector<8x128xf32> to vector<8x32xf32>
    %16 = arith.truncf %15 : vector<8x32xf32> to vector<8x32xbf16>
    %cst_12 = arith.constant dense<0.000000e+00> : vector<8x128xf32>
    %17 = tpu.matmul %16, %2, %cst_12 {dimension_numbers = #tpu.dot_dimension_numbers<[1], [0], [0], [1], [0, 0, 1, 1], [], []>} : vector<8x32xbf16>, vector<32x128xbf16>, vector<8x128xf32> -> vector<8x128xf32>
    %18 = vector.broadcast %6 : vector<1x128xf32> to vector<8x128xf32>
    %19 = arith.addf %17, %18 : vector<8x128xf32>
    %cst_13 = arith.constant 0.000000e+00 : f32
    %20 = vector.broadcast %cst_13 : f32 to vector<8x128xf32>
    %21 = arith.maximumf %19, %20 : vector<8x128xf32>
    %22 = vector.extract_strided_slice %21 {offsets = [0, 0], sizes = [8, 32], strides = [1, 1]} : vector<8x128xf32> to vector<8x32xf32>
    %23 = arith.truncf %22 : vector<8x32xf32> to vector<8x32xbf16>
    %cst_14 = arith.constant dense<0.000000e+00> : vector<8x128xf32>
    %24 = tpu.matmul %23, %3, %cst_14 {dimension_numbers = #tpu.dot_dimension_numbers<[1], [0], [0], [1], [0, 0, 1, 1], [], []>} : vector<8x32xbf16>, vector<32x128xbf16>, vector<8x128xf32> -> vector<8x128xf32>
    %25 = vector.broadcast %7 : vector<1x128xf32> to vector<8x128xf32>
    %26 = arith.addf %24, %25 : vector<8x128xf32>
    %cst_15 = arith.constant 0.000000e+00 : f32
    %27 = vector.broadcast %cst_15 : f32 to vector<8x128xf32>
    %28 = arith.maximumf %26, %27 : vector<8x128xf32>
    %29 = vector.broadcast %4 : vector<1x128xf32> to vector<8x128xf32>
    %30 = arith.mulf %28, %29 : vector<8x128xf32>
    %cst_16 = arith.constant dense<0.000000e+00> : vector<8xf32>
    %31 = vector.multi_reduction <add>, %30, %cst_16 [1] : vector<8x128xf32> to vector<8xf32>
    %32 = vector.shape_cast %31 : vector<8xf32> to vector<8x1xf32>
    %33 = vector.broadcast %8 : vector<1x1xf32> to vector<8x1xf32>
    %34 = arith.addf %32, %33 : vector<8x1xf32>
    %c0_17 = arith.constant 0 : index
    %c0_18 = arith.constant 0 : index
    %35 = vector.load %arg4[%c0_17, %c0_18] : memref<8x1xf32, #tpu.memory_space<vmem>>, vector<8x1xf32>
    tpu.vector_store %arg4[%c0_17, %c0_18], %34 {strides = array<i32>} : memref<8x1xf32, #tpu.memory_space<vmem>>, vector<8x1xf32>,
    return
  }
  func.func @transform_0(%arg0: i32) -> (i32, i32) {
    %c0_i32 = arith.constant 0 : i32
    %c0_i32_0 = arith.constant 0 : i32
    return %arg0, %c0_i32 : i32, i32
  }
  func.func @transform_1(%arg0: i32) -> (i32, i32) {
    %c0_i32 = arith.constant 0 : i32
    %c0_i32_0 = arith.constant 0 : i32
    %c0_i32_1 = arith.constant 0 : i32
    return %c0_i32, %c0_i32_0 : i32, i32
  }
  func.func @transform_2(%arg0: i32) -> (i32, i32) {
    %c0_i32 = arith.constant 0 : i32
    %c0_i32_0 = arith.constant 0 : i32
    %c0_i32_1 = arith.constant 0 : i32
    return %c0_i32, %c0_i32_0 : i32, i32
  }
  func.func @transform_3(%arg0: i32) -> (i32, i32) {
    %c0_i32 = arith.constant 0 : i32
    %c0_i32_0 = arith.constant 0 : i32
    return %arg0, %c0_i32 : i32, i32
  }
}

</mosaic_0001>

<llo_original>
// kernel: tpu_custom_call.1
$region0: #{tpu_custom_call.1}
  #allocation0 [shape = 'u32[]', space=smem, size = 0x4, offset = 0x4, fixed_abs, tag = 'smem constant byte address 0x4 - core index']
  #allocation1 [shape = 'u32[144,128]{1,0:T(1,128)}', space=vmem, size = 0x12000, scoped, tag = 'internal scratch']
  %s0 = inlined_call_operand.hbm [shape: f32[8,16], index: 0, kind: input, shape index: {}]
  %s1 = inlined_call_operand.hbm [shape: bf16[80,128], index: 1, kind: input, shape index: {}]
  %s2 = inlined_call_operand.hbm [shape: f32[8,128], index: 2, kind: input, shape index: {}]
  %s3 = inlined_call_operand.vmem [shape: f32[8,1], index: 3, kind: output, shape index: {}]
  %s4 = sld [smem:[#allocation0]]
  $region34: #{tpu_custom_call.1} parent=0
    _
  %s6 = ssub.s32 1, %s4
  %s7 = scalar_select 0, %s6, %s4
  $region1: #{tpu_custom_call.1} parent=0
    #allocation2 [shape = 'u8[4096]{0}', space=vmem, size = 0x1000, scoped, tag = 'input window, operand 0, single buffered']
    #allocation3 [shape = 's32[1]{0}', space=sflag, size = 0x4, scoped, tag = 'scoped memory for tpu_custom_call.1']
    #allocation4 [shape = 'u8[20480]{0}', space=vmem, size = 0x5000, scoped, tag = 'input window, operand 1, single buffered']
    #allocation5 [shape = 's32[1]{0}', space=sflag, size = 0x4, scoped, tag = 'scoped memory for tpu_custom_call.1']
    #allocation6 [shape = 'u8[4096]{0}', space=vmem, size = 0x1000, scoped, tag = 'input window, operand 2, single buffered']
    %8 = vsyncpa [#allocation3], 0
    %9 = vsyncpa [#allocation5], 0
    // Predicated region
    $region2: #{tpu_custom_call.1} parent=1 // pred_check
      _
    $region3: #{tpu_custom_call.1} parent=1 // pred_check_branch
      %11 = sbr.rel (0) target = $region5
    $region4: #{tpu_custom_call.1} parent=1 // pred_region
      %s13 = ssub.s32 128, 128
      %14 = vsyncadd [#allocation3], %s13
      %s16 = sshll.u32 [#allocation2], 4
      %s17 = int_to_ptr.vmem [resolvable:$true] %s16
      %19 = dma.hbm_to_vmem [thread:$0]  %s0, 128, %s17, [#allocation3]
    $region5: #{tpu_custom_call.1} parent=1 // pred_fallthru
      _
    // Predicated region
    $region6: #{tpu_custom_call.1} parent=1 // pred_check
      _
    $region7: #{tpu_custom_call.1} parent=1 // pred_check_branch
      %21 = sbr.rel (0) target = $region9
    $region8: #{tpu_custom_call.1} parent=1 // pred_region
      %s23 = ssub.s32 640, 640
      %24 = vsyncadd [#allocation5], %s23
      %s25 = sshll.u32 [#allocation4], 4
      %s26 = int_to_ptr.vmem [resolvable:$true] %s25
      %31 = dma.hbm_to_vmem [thread:$0]  %s1, 640, %s26, [#allocation5], 64, 64, 4
    $region9: #{tpu_custom_call.1} parent=1 // pred_fallthru
      _
    // Predicated region
    $region10: #{tpu_custom_call.1} parent=1 // pred_check
      _
    $region11: #{tpu_custom_call.1} parent=1 // pred_check_branch
      %33 = sbr.rel (0) target = $region13
    $region12: #{tpu_custom_call.1} parent=1 // pred_region
      %s35 = ssub.s32 128, 128
      %36 = vsyncadd [#allocation5], %s35
      %s38 = sshll.u32 [#allocation6], 4
      %s39 = int_to_ptr.vmem [resolvable:$true] %s38
      %41 = dma.hbm_to_vmem [thread:$0]  %s2, 128, %s39, [#allocation5]
    $region13: #{tpu_custom_call.1} parent=1 // pred_fallthru
      _
    // Predicated region
    $region14: #{tpu_custom_call.1} parent=1 // pred_check
      _
    $region15: #{tpu_custom_call.1} parent=1 // pred_check_branch
      %43 = sbr.rel (0) target = $region17
    $region16: #{tpu_custom_call.1} parent=1 // pred_region
      %44 = dma.done [#allocation3], 128
    $region17: #{tpu_custom_call.1} parent=1 // pred_fallthru
      _
    // Predicated region
    $region18: #{tpu_custom_call.1} parent=1 // pred_check
      _
    $region19: #{tpu_custom_call.1} parent=1 // pred_check_branch
      %46 = sbr.rel (0) target = $region21
    $region20: #{tpu_custom_call.1} parent=1 // pred_region
      %47 = dma.done [#allocation5], 640
    $region21: #{tpu_custom_call.1} parent=1 // pred_fallthru
      _
    // Predicated region
    $region22: #{tpu_custom_call.1} parent=1 // pred_check
      _
    $region23: #{tpu_custom_call.1} parent=1 // pred_check_branch
      %49 = sbr.rel (0) target = $region25
    $region24: #{tpu_custom_call.1} parent=1 // pred_region
      %50 = dma.done [#allocation5], 128
    $region25: #{tpu_custom_call.1} parent=1 // pred_fallthru
      _
    %v52 = vld [vmem:[#allocation2] sm:$0xff]
    %v53 = vld [vmem:[#allocation4] sm:$0xf]
    %v54 = vld [vmem:[#allocation4 + $0x4] sm:$0xf]
    %v55 = vld [vmem:[#allocation4 + $0x8] sm:$0xf]
    %v56 = vld [vmem:[#allocation4 + $0xc] sm:$0xf]
    %v57 = vld [vmem:[#allocation4 + $0x10] sm:$0xf]
    %v58 = vld [vmem:[#allocation4 + $0x14] sm:$0xf]
    %v59 = vld [vmem:[#allocation4 + $0x18] sm:$0xf]
    %v60 = vld [vmem:[#allocation4 + $0x1c] sm:$0xf]
    %v61 = vld [vmem:[#allocation4 + $0x20] sm:$0xf]
    %v62 = vld [vmem:[#allocation4 + $0x24] sm:$0xf]
    %v63 = vld [vmem:[#allocation6] sm:$0x1]
    %v64 = vld [vmem:[#allocation6 + $0x1] sm:$0x1]
    %v65 = vld [vmem:[#allocation6 + $0x2] sm:$0x1]
    %v66 = vld [vmem:[#allocation6 + $0x3] sm:$0x1]
    %v67 = vld [vmem:[#allocation6 + $0x4] sm:$0x1]
    %v68 = vpack.c.bf16 %v52, %v52
    %v69 = vlaneseq
    %v70 = vshrl.u32 %v69, 7
    %v71 = vsub.s32 0, %v70
    %v72 = vrot.slane %v64, %v71
    %v75 = vunpack.c.l.b16 %v53
    %v76 = vunpack.c.l.b16 %v54
    %v77 = vpack.c.b16 %v76, %v75
    %vm79 = vcmask 130048
    %v81 = vsel %vm79, %v68, 0
    %83 = vmatprep.subr.bf16.mxu0 0
    %84 = vmatpush1.bf16.msra.mxu0 0
    %85 = vmatprep.subr.bf16.mxu0 0
    %86 = vmatpush1.bf16.msra.mxu0 0
    %87 = vmatprep.subr.bf16.mxu0 0
    %88 = vmatpush1.bf16.msra.mxu0 0
    %89 = vmatprep.subr.bf16.mxu0 0
    %90 = vmatpush1.bf16.msra.mxu0 0
    %91 = vmatprep.subr.bf16.mxu0 0
    %92 = vmatpush1.bf16.msra.mxu0 0
    %93 = vmatprep.subr.bf16.mxu0 0
    %94 = vmatpush1.bf16.msra.mxu0 0
    %95 = vmatprep.subr.bf16.mxu0 0
    %96 = vmatpush1.bf16.msra.mxu0 0
    %97 = vmatprep.subr.bf16.mxu0 0
    %98 = vmatpush1.bf16.msra.mxu0 %v77
    %99 = vmatprep.subr.bf16.mxu0 0
    %100 = vmatpush2.bf16.msra.mxu0 0
    %101 = vmatprep.subr.bf16.mxu0 0
    %102 = vmatpush2.bf16.msra.mxu0 0
    %103 = vmatprep.subr.bf16.mxu0 0
    %104 = vmatpush2.bf16.msra.mxu0 0
    %105 = vmatprep.subr.bf16.mxu0 0
    %106 = vmatpush2.bf16.msra.mxu0 0
    %107 = vmatprep.subr.bf16.mxu0 0
    %108 = vmatpush2.bf16.msra.mxu0 0
    %109 = vmatprep.subr.bf16.mxu0 0
    %110 = vmatpush2.bf16.msra.mxu0 0
    %111 = vmatprep.subr.bf16.mxu0 0
    %112 = vmatpush2.bf16.msra.mxu0 0
    %113 = vmatprep.subr.bf16.mxu0 0
    %114 = vmatpush2.bf16.msra.mxu0 0
    %115 = vmatprep.mubr.bf16.mxu0 0
    %116 = vmatmul.mubr.bf16.gmra.mxu0 %v81
    %v117 = vpop.f32.mrf.mxu0
    %v118 = vadd.f32 %v72, %v117
    %v119 = vpop.f32.mrf.mxu0
    %v120 = vpop.f32.mrf.mxu0
    %v121 = vpop.f32.mrf.mxu0
    %122 = vdwg.mxu0
    %v123 = vmax.f32 %v118, 0.0
    %v124 = vpack.c.bf16 %v123, %v123
    %v125 = vlaneseq
    %v126 = vshrl.u32 %v125, 7
    %v127 = vsub.s32 0, %v126
    %v128 = vrot.slane %v65, %v127
    %v133 = vunpack.c.l.b16 %v55
    %v134 = vunpack.c.l.b16 %v56
    %v135 = vunpack.c.l.b16 %v57
    %v136 = vunpack.c.l.b16 %v58
    %v137 = vpack.c.b16 %v134, %v133
    %v138 = vpack.c.b16 %v136, %v135
    %vm141 = vcmask 261120
    %v143 = vsel %vm141, %v124, 0
    %145 = vmatprep.subr.bf16.mxu0 0
    %146 = vmatpush1.bf16.msra.mxu0 0
    %147 = vmatprep.subr.bf16.mxu0 0
    %148 = vmatpush1.bf16.msra.mxu0 0
    %149 = vmatprep.subr.bf16.mxu0 0
    %150 = vmatpush1.bf16.msra.mxu0 0
    %151 = vmatprep.subr.bf16.mxu0 0
    %152 = vmatpush1.bf16.msra.mxu0 0
    %153 = vmatprep.subr.bf16.mxu0 0
    %154 = vmatpush1.bf16.msra.mxu0 0
    %155 = vmatprep.subr.bf16.mxu0 0
    %156 = vmatpush1.bf16.msra.mxu0 0
    %157 = vmatprep.subr.bf16.mxu0 0
    %158 = vmatpush1.bf16.msra.mxu0 %v138
    %159 = vmatprep.subr.bf16.mxu0 0
    %160 = vmatpush1.bf16.msra.mxu0 %v137
    %161 = vmatprep.subr.bf16.mxu0 0
    %162 = vmatpush2.bf16.msra.mxu0 0
    %163 = vmatprep.subr.bf16.mxu0 0
    %164 = vmatpush2.bf16.msra.mxu0 0
    %165 = vmatprep.subr.bf16.mxu0 0
    %166 = vmatpush2.bf16.msra.mxu0 0
    %167 = vmatprep.subr.bf16.mxu0 0
    %168 = vmatpush2.bf16.msra.mxu0 0
    %169 = vmatprep.subr.bf16.mxu0 0
    %170 = vmatpush2.bf16.msra.mxu0 0
    %171 = vmatprep.subr.bf16.mxu0 0
    %172 = vmatpush2.bf16.msra.mxu0 0
    %173 = vmatprep.subr.bf16.mxu0 0
    %174 = vmatpush2.bf16.msra.mxu0 0
    %175 = vmatprep.subr.bf16.mxu0 0
    %176 = vmatpush2.bf16.msra.mxu0 0
    %177 = vmatprep.mubr.bf16.mxu0 0
    %178 = vmatmul.mubr.bf16.gmra.mxu0 %v143
    %v179 = vpop.f32.mrf.mxu0
    %v180 = vadd.f32 %v128, %v179
    %v181 = vpop.f32.mrf.mxu0
    %v182 = vpop.f32.mrf.mxu0
    %v183 = vpop.f32.mrf.mxu0
    %184 = vdwg.mxu0
    %v185 = vmax.f32 %v180, 0.0
    %v186 = vpack.c.bf16 %v185, %v185
    %v187 = vlaneseq
    %v188 = vshrl.u32 %v187, 7
    %v189 = vsub.s32 0, %v188
    %v190 = vrot.slane %v66, %v189
    %v195 = vunpack.c.l.b16 %v59
    %v196 = vunpack.c.l.b16 %v60
    %v197 = vunpack.c.l.b16 %v61
    %v198 = vunpack.c.l.b16 %v62
    %v199 = vpack.c.b16 %v196, %v195
    %v200 = vpack.c.b16 %v198, %v197
    %v204 = vsel %vm141, %v186, 0
    %206 = vmatprep.subr.bf16.mxu0 0
    %207 = vmatpush1.bf16.msra.mxu0 0
    %208 = vmatprep.subr.bf16.mxu0 0
    %209 = vmatpush1.bf16.msra.mxu0 0
    %210 = vmatprep.subr.bf16.mxu0 0
    %211 = vmatpush1.bf16.msra.mxu0 0
    %212 = vmatprep.subr.bf16.mxu0 0
    %213 = vmatpush1.bf16.msra.mxu0 0
    %214 = vmatprep.subr.bf16.mxu0 0
    %215 = vmatpush1.bf16.msra.mxu0 0
    %216 = vmatprep.subr.bf16.mxu0 0
    %217 = vmatpush1.bf16.msra.mxu0 0
    %218 = vmatprep.subr.bf16.mxu0 0
    %219 = vmatpush1.bf16.msra.mxu0 %v200
    %220 = vmatprep.subr.bf16.mxu0 0
    %221 = vmatpush1.bf16.msra.mxu0 %v199
    %222 = vmatprep.subr.bf16.mxu0 0
    %223 = vmatpush2.bf16.msra.mxu0 0
    %224 = vmatprep.subr.bf16.mxu0 0
    %225 = vmatpush2.bf16.msra.mxu0 0
    %226 = vmatprep.subr.bf16.mxu0 0
    %227 = vmatpush2.bf16.msra.mxu0 0
    %228 = vmatprep.subr.bf16.mxu0 0
    %229 = vmatpush2.bf16.msra.mxu0 0
    %230 = vmatprep.subr.bf16.mxu0 0
    %231 = vmatpush2.bf16.msra.mxu0 0
    %232 = vmatprep.subr.bf16.mxu0 0
    %233 = vmatpush2.bf16.msra.mxu0 0
    %234 = vmatprep.subr.bf16.mxu0 0
    %235 = vmatpush2.bf16.msra.mxu0 0
    %236 = vmatprep.subr.bf16.mxu0 0
    %237 = vmatpush2.bf16.msra.mxu0 0
    %238 = vmatprep.mubr.bf16.mxu0 0
    %239 = vmatmul.mubr.bf16.gmra.mxu0 %v204
    %v240 = vpop.f32.mrf.mxu0
    %v241 = vadd.f32 %v190, %v240
    %v242 = vpop.f32.mrf.mxu0
    %v243 = vpop.f32.mrf.mxu0
    %v244 = vpop.f32.mrf.mxu0
    %245 = vdwg.mxu0
    %v246 = vmax.f32 %v241, 0.0
    %v247 = vlaneseq
    %v248 = vshrl.u32 %v247, 7
    %v249 = vsub.s32 0, %v248
    %v250 = vrot.slane %v63, %v249
    %v251 = vmul.f32 %v246, %v250
    %252 = vadd.xlane.f32.xlu0 %v251
    %v253 = vpop.xlane.xlu0 %252
    %v254 = vlaneseq
    %v255 = vshrl.u32 %v254, 7
    %v256 = vsub.s32 0, %v255
    %v257 = vrot.slane %v67, %v256
    %v258 = vadd.f32 %v253, %v257
    %vm259 = vcmask 7168
    %260 = vst.msk [vmem:[%s3] sm:$0xff] %vm259, %v258
    // Predicated region
    $region26: #{tpu_custom_call.1} parent=1 // pred_check
      _
    $region27: #{tpu_custom_call.1} parent=1 // pred_check_branch
      %262 = sbr.rel (0) target = $region29
    $region28: #{tpu_custom_call.1} parent=1 // pred_region
      _
    $region29: #{tpu_custom_call.1} parent=1 // pred_fallthru
      _
    // Predicated region
    $region30: #{tpu_custom_call.1} parent=1 // pred_check
      _
    $region31: #{tpu_custom_call.1} parent=1 // pred_check_branch
      %264 = sbr.rel (0) target = $region33
    $region32: #{tpu_custom_call.1} parent=1 // pred_region
      _
    $region33: #{tpu_custom_call.1} parent=1 // pred_fallthru
      _
    %265 = vsyncpa [#allocation3], 1
    %266 = vsyncpa [#allocation5], 1

</llo_original>
